<compile_context>
chip_gen: v7x
topology: tpu7x:2x2x1
jax: 0.10.0
libtpu: 0.0.40
codegen_flags: <defaults>
</compile_context>

<pallas_src>
import functools

import jax
import jax.numpy as jnp
from jax.experimental import pallas as pl
from jax.experimental.pallas import tpu as pltpu


def _round_up(x: int, m: int) -> int:
    return ((x + m - 1) // m) * m


def _cdiv(a: int, b: int) -> int:
    return -(-a // b)


def _default_num_parallel() -> int:
    """2 batch splits on v7x (2 TensorCores per chip), 1 on single-TC v5e/v6e."""
    try:
        kind = jax.devices()[0].device_kind.lower()
    except Exception:
        return 1
    return 2 if "v7" in kind else 1


def _focal_loss_kernel(logits_ref, targets_ref, out_ref, *, alpha, gamma, epsilon,
                       n_true, tile_rows, n_row_blocks):
    p = pl.program_id(0)
    t = pl.program_id(1)
    num_t = pl.num_programs(1)

    # The (1,1,1) output block stays resident across the "arbitrary" t axis.
    @pl.when(t == 0)
    def _():
        out_ref[...] = jnp.zeros_like(out_ref)

    logits = logits_ref[...].astype(jnp.float32)          # (TN, C)
    tgt = targets_ref[...]                                # (TN, 1) int32
    tn, c = logits.shape

    # Numerically-stable log-sum-exp over the class axis.
    m = jnp.max(logits, axis=-1, keepdims=True)           # (TN, 1)
    lse = m + jnp.log(jnp.sum(jnp.exp(logits - m), axis=-1, keepdims=True))

    # Target logit via one-hot select on the raw logits (no log_probs, and the
    # shifted tensor above feeds only the exp).
    cls_ids = jax.lax.broadcasted_iota(jnp.int32, (1, c), 1)
    tgt_logit = jnp.sum(jnp.where(cls_ids == tgt, logits, 0.0),
                        axis=-1, keepdims=True)           # (TN, 1)
    ce = lse - tgt_logit                                  # (TN, 1), >= 0

    pt = jnp.exp(-ce)
    focal = alpha * jnp.power(1.0 - pt + epsilon, gamma) * ce  # (TN, 1)

    # Mask:
    #  * rows past the true batch size (partial last block reads garbage), and
    #  * whole blocks whose index is past the last row block (index map clamps
    #    those DMAs to the last valid block; their contribution must be zero).
    blk = p * num_t + t
    row_ids = blk * tile_rows + jax.lax.broadcasted_iota(jnp.int32, (tn, 1), 0)
    valid = jnp.logical_and(blk < n_row_blocks, row_ids < n_true)
    focal = jnp.where(valid, focal, 0.0)

    out_ref[...] = out_ref[...] + jnp.sum(focal)


def dynamic_focal_loss(logits, targets, epoch=None, alpha=0.5, gamma=1.5,
                       epsilon=1e-7, num_parallel=None,
                       vmem_budget_bytes=20 * 1024 * 1024):
    """Pallas TPU implementation of DynamicFocalLoss.forward.

    logits:  (N, C) float array (any float dtype; streamed natively, f32 math)
    targets: (N,)   integer class indices
    epoch:   optional *static* Python int; adjusts alpha/gamma like the torch module
    """
    if epoch is not None:
        alpha = min(0.5 + 0.1 * (epoch / 10), 0.8)
        gamma = max(1.5 - 0.1 * (epoch / 10), 1.0)

    n, c = logits.shape
    targets_2d = targets.astype(jnp.int32).reshape(n, 1)

    p_splits = _default_num_parallel() if num_parallel is None else int(num_parallel)
    p_splits = max(1, p_splits)

    # Row-tile sizing by VMEM bytes: double-buffered native-dtype logits block,
    # ~2 f32 (tn, C) intermediates, and the double-buffered (tn,1) int32 targets
    # block which pads to 128 lanes (512 B/row).
    c_lanes = _round_up(c, 128)
    itemsize = jnp.dtype(logits.dtype).itemsize
    row_bytes = 2 * c_lanes * itemsize + 2 * c_lanes * 4 + 2 * 512
    tn = (vmem_budget_bytes // row_bytes) // 8 * 8
    tn = max(8, min(tn, 8192))
    tn = min(tn, _round_up(_cdiv(n, p_splits), 8))

    n_row_blocks = _cdiv(n, tn)
    t_steps = _cdiv(n_row_blocks, p_splits)

    kernel = functools.partial(
        _focal_loss_kernel,
        alpha=float(alpha), gamma=float(gamma), epsilon=float(epsilon),
        n_true=n, tile_rows=tn, n_row_blocks=n_row_blocks)

    def row_map(p, t):
        # Clamp so a block index past the end (only when n_row_blocks does not
        # split evenly over p_splits*t_steps) never issues an out-of-range DMA;
        # the kernel zeroes that block's contribution.
        return (jnp.minimum(p * t_steps + t, n_row_blocks - 1), 0)

    cost = pl.CostEstimate(
        flops=8 * n * c,
        transcendentals=n * c + 5 * n,
        bytes_accessed=n * c * itemsize + n * 4 + p_splits * 4,
    )

    partials = pl.pallas_call(
        kernel,
        out_shape=jax.ShapeDtypeStruct((p_splits, 1, 1), jnp.float32),
        grid_spec=pltpu.PrefetchScalarGridSpec(
            num_scalar_prefetch=0,
            grid=(p_splits, t_steps),
            in_specs=[
                pl.BlockSpec((tn, c), row_map),   # full class dim -> no pad copy
                pl.BlockSpec((tn, 1), row_map),
            ],
            out_specs=pl.BlockSpec((1, 1, 1), lambda p, t: (p, 0, 0)),
        ),
        compiler_params=pltpu.CompilerParams(
            dimension_semantics=("parallel", "arbitrary"),
            vmem_limit_bytes=32 * 1024 * 1024,
        ),
        cost_estimate=cost,
    )(logits, targets_2d)

    return jnp.sum(partials) / jnp.float32(n)


def _reference(logits, targets, epoch=None, alpha=0.5, gamma=1.5, epsilon=1e-7):
    if epoch is not None:
        alpha = min(0.5 + 0.1 * (epoch / 10), 0.8)
        gamma = max(1.5 - 0.1 * (epoch / 10), 1.0)
    logits = logits.astype(jnp.float32)
    log_probs = jax.nn.log_softmax(logits, axis=-1)
    ce = -jnp.take_along_axis(log_probs, targets[:, None].astype(jnp.int32), axis=-1)[:, 0]
    pt = jnp.exp(-ce)
    focal = alpha * (1.0 - pt + epsilon) ** gamma * ce
    return jnp.mean(focal)


if __name__ == "__main__":
    key = jax.random.PRNGKey(0)
    k_logits, k_targets = jax.random.split(key)

    N, C = 8, 32  # small batch of logits over 32 classes
    logits = jax.random.normal(k_logits, (N, C), dtype=jnp.float32)
    targets = jax.random.randint(k_targets, (N,), 0, C, dtype=jnp.int32)

    loss = dynamic_focal_loss(logits, targets, epoch=3)
    loss = jax.block_until_ready(loss)

    ref = _reference(logits, targets, epoch=3)
    assert jnp.allclose(loss, ref, rtol=1e-5, atol=1e-6), (loss, ref)

    print("KERNEL_OK")
</pallas_src>

<mosaic_0001>
module attributes {stable_mosaic.version = 11 : i64} {
  func.func @_focal_loss_kernel(%arg0: i32, %arg1: i32, %arg2: memref<8x32xf32, #tpu.memory_space<vmem>>, %arg3: memref<8x1xi32, #tpu.memory_space<vmem>>, %arg4: memref<1x1x1xf32, #tpu.memory_space<vmem>>) attributes {dimension_semantics = [#tpu.dimension_semantics<parallel>, #tpu.dimension_semantics<arbitrary>], iteration_bounds = array<i64: 1, 1>, scalar_prefetch = 0 : i64, scratch_operands = 0 : i64, tpu.core_type = #tpu.core_type<tc>, window_params = [{transform_indices = @transform_0, window_bounds = array<i64: 8, 32>}, {transform_indices = @transform_1, window_bounds = array<i64: 8, 1>}, {transform_indices = @transform_2, window_bounds = array<i64: 1, 1, 1>}]} {
    %c0_i32 = arith.constant 0 : i32
    %0 = arith.cmpi eq, %arg1, %c0_i32 : i32
    %1 = arith.extui %0 : i1 to i32
    %c0_i32_0 = arith.constant 0 : i32
    %2 = arith.cmpi ne, %1, %c0_i32_0 : i32
    scf.if %2 {
      %cst_22 = arith.constant 0.000000e+00 : f32
      %56 = vector.broadcast %cst_22 : f32 to vector<1x1x1xf32>
      %c0_23 = arith.constant 0 : index
      %c0_24 = arith.constant 0 : index
      %c0_25 = arith.constant 0 : index
      %57 = vector.load %arg4[%c0_23, %c0_24, %c0_25] : memref<1x1x1xf32, #tpu.memory_space<vmem>>, vector<1x1x1xf32>
      tpu.vector_store %arg4[%c0_23, %c0_24, %c0_25], %56 {strides = array<i32>} : memref<1x1x1xf32, #tpu.memory_space<vmem>>, vector<1x1x1xf32>,
    } else {
    }
    %c0 = arith.constant 0 : index
    %c0_1 = arith.constant 0 : index
    %3 = vector.load %arg2[%c0, %c0_1] : memref<8x32xf32, #tpu.memory_space<vmem>>, vector<8x32xf32>
    %c0_2 = arith.constant 0 : index
    %c0_3 = arith.constant 0 : index
    %4 = vector.load %arg3[%c0_2, %c0_3] : memref<8x1xi32, #tpu.memory_space<vmem>>, vector<8x1xi32>
    %cst = arith.constant dense<0xFF800000> : vector<8xf32>
    %5 = vector.multi_reduction <maximumf>, %3, %cst [1] : vector<8x32xf32> to vector<8xf32>
    %6 = vector.shape_cast %5 : vector<8xf32> to vector<8x1xf32>
    %7 = vector.broadcast %6 : vector<8x1xf32> to vector<8x32xf32>
    %8 = arith.subf %3, %7 : vector<8x32xf32>
    %9 = math.exp %8 : vector<8x32xf32>
    %cst_4 = arith.constant dense<0.000000e+00> : vector<8xf32>
    %10 = vector.multi_reduction <add>, %9, %cst_4 [1] : vector<8x32xf32> to vector<8xf32>
    %11 = vector.shape_cast %10 : vector<8xf32> to vector<8x1xf32>
    %12 = math.log %11 : vector<8x1xf32>
    %13 = arith.addf %6, %12 : vector<8x1xf32>
    %14 = tpu.iota {dimensions = array<i32: 1>} : vector<1x32xi32>
    %15 = vector.broadcast %14 : vector<1x32xi32> to vector<8x32xi32>
    %16 = vector.broadcast %4 : vector<8x1xi32> to vector<8x32xi32>
    %17 = arith.cmpi eq, %15, %16 : vector<8x32xi32>
    %cst_5 = arith.constant 0.000000e+00 : f32
    %18 = vector.broadcast %cst_5 : f32 to vector<8x32xf32>
    %19 = arith.select %17, %3, %18 : vector<8x32xi1>, vector<8x32xf32>
    %cst_6 = arith.constant dense<0.000000e+00> : vector<8xf32>
    %20 = vector.multi_reduction <add>, %19, %cst_6 [1] : vector<8x32xf32> to vector<8xf32>
    %21 = vector.shape_cast %20 : vector<8xf32> to vector<8x1xf32>
    %22 = arith.subf %13, %21 : vector<8x1xf32>
    %cst_7 = arith.constant 0.000000e+00 : f32
    %23 = vector.broadcast %cst_7 : f32 to vector<8x1xf32>
    %24 = arith.subf %23, %22 : vector<8x1xf32>
    %25 = math.exp %24 : vector<8x1xf32>
    %cst_8 = arith.constant 1.000000e+00 : f32
    %26 = vector.broadcast %cst_8 : f32 to vector<8x1xf32>
    %27 = arith.subf %26, %25 : vector<8x1xf32>
    %cst_9 = arith.constant 1.000000e-07 : f32
    %28 = vector.broadcast %cst_9 : f32 to vector<8x1xf32>
    %29 = arith.addf %27, %28 : vector<8x1xf32>
    %cst_10 = arith.constant 1.470000e+00 : f32
    %30 = vector.broadcast %cst_10 : f32 to vector<8x1xf32>
    %31 = math.powf %29, %30 : vector<8x1xf32>
    %cst_11 = arith.constant 5.300000e-01 : f32
    %32 = vector.broadcast %cst_11 : f32 to vector<8x1xf32>
    %33 = arith.mulf %32, %31 : vector<8x1xf32>
    %34 = arith.mulf %33, %22 : vector<8x1xf32>
    %c1_i32 = arith.constant 1 : i32
    %35 = arith.muli %arg0, %c1_i32 : i32
    %36 = arith.addi %35, %arg1 : i32
    %c8_i32 = arith.constant 8 : i32
    %37 = arith.muli %36, %c8_i32 : i32
    %38 = tpu.iota {dimensions = array<i32: 0>} : vector<8x1xi32>
    %39 = vector.broadcast %37 : i32 to vector<8x1xi32>
    %40 = arith.addi %39, %38 : vector<8x1xi32>
    %c1_i32_12 = arith.constant 1 : i32
    %41 = arith.cmpi slt, %36, %c1_i32_12 : i32
    %c8_i32_13 = arith.constant 8 : i32
    %42 = vector.broadcast %c8_i32_13 : i32 to vector<8x1xi32>
    %43 = arith.cmpi slt, %40, %42 : vector<8x1xi32>
    %44 = vector.broadcast %41 : i1 to vector<8x1xi1>
    %45 = arith.andi %44, %43 : vector<8x1xi1>
    %cst_14 = arith.constant 0.000000e+00 : f32
    %46 = vector.broadcast %cst_14 : f32 to vector<8x1xf32>
    %47 = arith.select %45, %34, %46 : vector<8x1xi1>, vector<8x1xf32>
    %c0_15 = arith.constant 0 : index
    %c0_16 = arith.constant 0 : index
    %c0_17 = arith.constant 0 : index
    %48 = vector.load %arg4[%c0_15, %c0_16, %c0_17] : memref<1x1x1xf32, #tpu.memory_space<vmem>>, vector<1x1x1xf32>
    %49 = vector.shape_cast %47 : vector<8x1xf32> to vector<1x8x1xf32>
    %cst_18 = arith.constant dense<0.000000e+00> : vector<1xf32>
    %50 = vector.multi_reduction <add>, %49, %cst_18 [1, 2] : vector<1x8x1xf32> to vector<1xf32>
    %51 = vector.shape_cast %50 : vector<1xf32> to vector<1x1x1xf32>
    %52 = vector.extract %51[0, 0, 0] : f32 from vector<1x1x1xf32>
    %53 = vector.broadcast %52 : f32 to vector<1x1x1xf32>
    %54 = arith.addf %48, %53 : vector<1x1x1xf32>
    %c0_19 = arith.constant 0 : index
    %c0_20 = arith.constant 0 : index
    %c0_21 = arith.constant 0 : index
    %55 = vector.load %arg4[%c0_19, %c0_20, %c0_21] : memref<1x1x1xf32, #tpu.memory_space<vmem>>, vector<1x1x1xf32>
    tpu.vector_store %arg4[%c0_19, %c0_20, %c0_21], %54 {strides = array<i32>} : memref<1x1x1xf32, #tpu.memory_space<vmem>>, vector<1x1x1xf32>,
    return
  }
  func.func @transform_0(%arg0: i32, %arg1: i32) -> (i32, i32) {
    %c1_i32 = arith.constant 1 : i32
    %0 = arith.muli %arg0, %c1_i32 : i32
    %1 = arith.addi %0, %arg1 : i32
    %c0_i32 = arith.constant 0 : i32
    %2 = arith.minsi %1, %c0_i32 : i32
    %c0_i32_0 = arith.constant 0 : i32
    %c0_i32_1 = arith.constant 0 : i32
    return %2, %c0_i32_0 : i32, i32
  }
  func.func @transform_1(%arg0: i32, %arg1: i32) -> (i32, i32) {
    %c1_i32 = arith.constant 1 : i32
    %0 = arith.muli %arg0, %c1_i32 : i32
    %1 = arith.addi %0, %arg1 : i32
    %c0_i32 = arith.constant 0 : i32
    %2 = arith.minsi %1, %c0_i32 : i32
    %c0_i32_0 = arith.constant 0 : i32
    %c0_i32_1 = arith.constant 0 : i32
    return %2, %c0_i32_0 : i32, i32
  }
  func.func @transform_2(%arg0: i32, %arg1: i32) -> (i32, i32, i32) {
    %c0_i32 = arith.constant 0 : i32
    %c0_i32_0 = arith.constant 0 : i32
    %c0_i32_1 = arith.constant 0 : i32
    return %arg0, %c0_i32, %c0_i32_0 : i32, i32, i32
  }
}

</mosaic_0001>

<llo_original>
// kernel: tpu_custom_call.1
$region0: #{tpu_custom_call.1}
  #allocation0 [shape = 'u32[]', space=smem, size = 0x4, offset = 0x4, fixed_abs, tag = 'smem constant byte address 0x4 - core index']
  #allocation1 [shape = 'u32[144,128]{1,0:T(1,128)}', space=vmem, size = 0x12000, scoped, tag = 'internal scratch']
  %s0 = inlined_call_operand.vmem [shape: f32[8,32], index: 0, kind: input, shape index: {}]
  %s1 = inlined_call_operand.vmem [shape: s32[8,1], index: 1, kind: input, shape index: {}]
  %s2 = inlined_call_operand.hbm [shape: f32[1,1,1], index: 2, kind: output, shape index: {}]
  %s3 = sld [smem:[#allocation0]]
  $region22: #{tpu_custom_call.1} parent=0
    _
  %s5 = ssub.s32 1, %s3
  %s6 = scalar_select 0, %s5, %s3
  $region1: #{tpu_custom_call.1} parent=0
    #allocation2 [shape = 'u8[512]{0}', space=vmem, size = 0x400, scoped, tag = 'output window, operand 0, single buffered']
    #allocation3 [shape = 's32[1]{0}', space=sflag, size = 0x4, scoped, tag = 'scoped memory for tpu_custom_call.1']
    %7 = vsyncpa [#allocation3], 0
    // Predicated region
    $region2: #{tpu_custom_call.1} parent=1 // pred_check
      _
    $region3: #{tpu_custom_call.1} parent=1 // pred_check_branch
      %9 = sbr.rel (0) target = $region5
    $region4: #{tpu_custom_call.1} parent=1 // pred_region
      %s10 = sadd.s32 0, 0
      %p11 = scmp.lt.s32.totalorder %s10, 0
      %s12 = scalar_select %p11, %s10, 0
      %p13 = scmp.lt.s32.totalorder %s12, 0
      %s14 = scalar_select %p13, %s12, 0
      %s15 = smul.addr %s14, 8
      %s16 = scalar_lea.vmem %s0, %s15
      %s17 = sadd.s32 0, 0
      %p18 = scmp.lt.s32.totalorder %s17, 0
      %s19 = scalar_select %p18, %s17, 0
    $region5: #{tpu_custom_call.1} parent=1 // pred_fallthru
      _
    // Predicated region
    $region6: #{tpu_custom_call.1} parent=1 // pred_check
      _
    $region7: #{tpu_custom_call.1} parent=1 // pred_check_branch
      %21 = sbr.rel (0) target = $region9
    $region8: #{tpu_custom_call.1} parent=1 // pred_region
      %s22 = sadd.s32 0, 0
      %p23 = scmp.lt.s32.totalorder %s22, 0
      %s24 = scalar_select %p23, %s22, 0
      %p25 = scmp.lt.s32.totalorder %s24, 0
      %s26 = scalar_select %p25, %s24, 0
      %s27 = smul.addr %s26, 8
      %s28 = scalar_lea.vmem %s1, %s27
      %s29 = sadd.s32 0, 0
      %p30 = scmp.lt.s32.totalorder %s29, 0
      %s31 = scalar_select %p30, %s29, 0
    $region9: #{tpu_custom_call.1} parent=1 // pred_fallthru
      _
    %s32 = sadd.s32 0, 0
    %p33 = scmp.lt.s32.totalorder %s32, 0
    %s34 = scalar_select %p33, %s32, 0
    %p35 = scmp.lt.s32.totalorder %s34, 0
    %s36 = scalar_select %p35, %s34, 0
    %s37 = smul.addr %s36, 8
    %s38 = scalar_lea.vmem %s0, %s37
    %s39 = sadd.s32 0, 0
    %p40 = scmp.lt.s32.totalorder %s39, 0
    %s41 = scalar_select %p40, %s39, 0
    %p42 = scmp.lt.s32.totalorder %s41, 0
    %s43 = scalar_select %p42, %s41, 0
    %s44 = smul.addr %s43, 8
    %s45 = scalar_lea.vmem %s1, %s44
    %s46 = sadd.s32 0, 0
    %p47 = scmp.lt.s32.totalorder %s46, 0
    %s48 = scalar_select %p47, %s46, 0
    %p49 = scmp.lt.s32.totalorder %s48, 0
    %s50 = scalar_select %p49, %s48, 0
    %s51 = smul.addr %s50, 8
    %s52 = scalar_lea.vmem %s0, %s51
    %s53 = sadd.s32 0, 0
    %p54 = scmp.lt.s32.totalorder %s53, 0
    %s55 = scalar_select %p54, %s53, 0
    %s56 = sadd.s32 0, 0
    %p57 = scmp.lt.s32.totalorder %s56, 0
    %s58 = scalar_select %p57, %s56, 0
    %p59 = scmp.lt.s32.totalorder %s58, 0
    %s60 = scalar_select %p59, %s58, 0
    %s61 = smul.addr %s60, 8
    %s62 = scalar_lea.vmem %s1, %s61
    %s63 = sadd.s32 0, 0
    %p64 = scmp.lt.s32.totalorder %s63, 0
    %s65 = scalar_select %p64, %s63, 0
    %p66 = scmp.eq.s32.totalorder 0, 0
    // Predicated region
    $region10: #{tpu_custom_call.1} parent=1 // pred_check
      %p67 = pneg %p66
    $region11: #{tpu_custom_call.1} parent=1 // pred_check_branch
      %69 = sbr.rel (%p67) target = $region13
    $region12: #{tpu_custom_call.1} parent=1 // pred_region
      %vm70 = vcmask 0
      %71 = vst.msk [vmem:[#allocation2] sm:$0x1] %vm70, 0.0
    $region13: #{tpu_custom_call.1} parent=1 // pred_fallthru
      _
    %v72 = vld [vmem:[%s52] sm:$0xff]
    %v73 = vld [vmem:[%s62] sm:$0xff]
    %vm74 = vcmask 261120
    %v75 = vsel %vm74, %v72, -inf
    %76 = vmax.xlane.f32.xlu0 %v75
    %v77 = vpop.xlane.xlu0 %76
    %v78 = vsub.f32 %v72, %v77
    %v79 = vmul.f32 %v78, 1.442695
    %v80 = vpow.pop %v79
    %v81 = vsel %vm74, %v80, 0.0
    %82 = vadd.xlane.f32.xlu0 %v81
    %v83 = vpop.xlane.xlu0 %82
    %v84 = vlog2.pop %v83
    %v85 = vmul.f32 %v84, 0.6931472
    %v86 = vadd.f32 %v77, %v85
    %v87 = vlaneseq
    %v88 = vand.u32 %v87, 127
    %89 = vset.pattern.permute.xlu0 0
    %90 = vperm.xlu0 %89, %v73
    %v91 = vpop.permute.xlu0 %90
    %vm92 = vcmp.eq.s32.totalorder %v88, %v91
    %v93 = vsel %vm92, %v72, 0.0
    %v94 = vsel %vm74, %v93, 0.0
    %95 = vadd.xlane.f32.xlu0 %v94
    %v96 = vpop.xlane.xlu0 %95
    %v97 = vsub.f32 %v86, %v96
    %v98 = vsub.f32 0.0, %v97
    %v99 = vmul.f32 %v98, 1.442695
    %v100 = vpow.pop %v99
    %v101 = vsub.f32 1.0, %v100
    %v102 = vadd.f32 %v101, 1e-07
    %v103 = vpow.f32 %v102, 1.47
    %v104 = vmul.f32 %v103, 0.53
    %v105 = vmul.f32 %v104, %v97
    %s106 = sadd.s32 0, 0
    %s107 = smul.u32 %s106, 8
    %v108 = vlaneseq
    %v109 = vshrl.u32 %v108, 7
    %v110 = vstv %s107
    %v111 = vadd.s32 %v110, %v109
    %p112 = scmp.lt.s32.totalorder %s106, 1
    %vm113 = vcmp.lt.s32.totalorder %v111, 8
    %s114 = scalar_select %p112, 1, 0
    %v115 = vstv %s114
    %vm116 = vcmp.eq.s32.totalorder %v115, 1
    %vm117 = vmand %vm116, %vm113
    %v118 = vsel %vm117, %v105, 0.0
    %v119 = vld [vmem:[#allocation2] sm:$0x1]
    %vm120 = vcmask 7168
    %v121 = vsel %vm120, %v118, 0.0
    %122 = vadd.xlane.f32.xlu0 %v121
    %v123 = vpop.xlane.xlu0 %122
    %v124 = vrot.slane %v123, 4
    %v125 = vadd.f32 %v123, %v124
    %v126 = vrot.slane %v125, 2
    %v127 = vadd.f32 %v125, %v126
    %v128 = vrot.slane %v127, 1
    %v129 = vadd.f32 %v127, %v128
    %s130 = vtos %v129
    %v131 = vstv %s130
    %v132 = vadd.f32 %v119, %v131
    %vm133 = vcmask 0
    %134 = vst.msk [vmem:[#allocation2] sm:$0x1] %vm133, %v132
    // Predicated region
    $region14: #{tpu_custom_call.1} parent=1 // pred_check
      _
    $region15: #{tpu_custom_call.1} parent=1 // pred_check_branch
      %136 = sbr.rel (0) target = $region17
    $region16: #{tpu_custom_call.1} parent=1 // pred_region
      %s138 = ssub.s32 16, 16
      %139 = vsyncadd [#allocation3], %s138
      %s141 = sshll.u32 [#allocation2], 4
      %s142 = int_to_ptr.vmem [resolvable:$true] %s141
      %144 = dma.vmem_to_hbm [thread:$0]  %s142, 16, %s2, [#allocation3]
    $region17: #{tpu_custom_call.1} parent=1 // pred_fallthru
      _
    // Predicated region
    $region18: #{tpu_custom_call.1} parent=1 // pred_check
      _
    $region19: #{tpu_custom_call.1} parent=1 // pred_check_branch
      %146 = sbr.rel (0) target = $region21
    $region20: #{tpu_custom_call.1} parent=1 // pred_region
      %147 = dma.done [#allocation3], 16
    $region21: #{tpu_custom_call.1} parent=1 // pred_fallthru
      _
    %148 = vsyncpa [#allocation3], 1

</llo_original>
